<compile_context>
chip_gen: v5e
topology: v5e:2x2
jax: 0.10.0
libtpu: 0.0.40
codegen_flags: <defaults>
</compile_context>

<pallas_src>
import jax
import jax.numpy as jnp
from jax.experimental import pallas as pl
from jax.experimental.pallas import tpu as pltpu

STATE_DIM = 3
ACTION_DIM = 1
IN_DIM = STATE_DIM + ACTION_DIM      # 4
HIDDEN = 256
OUT_DIM = ACTION_DIM                 # 1
NEG_SLOPE = 0.01                     # F.leaky_relu default
TILE_B = 512                         # batch rows per grid step (multiple of 256)


def _leaky_relu(x):
    return jnp.where(x > 0, x, NEG_SLOPE * x)


def critic_kernel(x_ref, a_ref,
                  w0_ref, b0_ref,
                  w1_ref, b1_ref,
                  w2_ref, b2_ref,
                  w3_ref, b3_ref,
                  out_ref):
    x = x_ref[...]                    # (TB, STATE_DIM)  f32
    a = a_ref[...]                    # (TB, ACTION_DIM) f32
    w0 = w0_ref[...]                  # (IN_DIM, HIDDEN) f32

    # ---- Layer 0 on the VPU (K=4 is too narrow to be worth an MXU pass).
    # Also fuses the [state, action] concat: h = x @ w0[:3] + a @ w0[3:] + b0.
    h = b0_ref[...]                                       # (1, H) f32
    for k in range(STATE_DIM):
        h = h + x[:, k:k + 1] * w0[k:k + 1, :]
    for k in range(ACTION_DIM):
        j = STATE_DIM + k
        h = h + a[:, k:k + 1] * w0[j:j + 1, :]
    h = _leaky_relu(h)                                    # (TB, H) f32

    # ---- Hidden layers on the MXU: bf16 operands, f32 accumulation,
    #      bias-add + leaky_relu in f32 on the VPU.
    h = jnp.dot(h.astype(jnp.bfloat16), w1_ref[...],
                preferred_element_type=jnp.float32) + b1_ref[...]
    h = _leaky_relu(h)
    h = jnp.dot(h.astype(jnp.bfloat16), w2_ref[...],
                preferred_element_type=jnp.float32) + b2_ref[...]
    h = _leaky_relu(h)

    # ---- Output layer (K=256, N=1).
    out = jnp.dot(h.astype(jnp.bfloat16), w3_ref[...],
                  preferred_element_type=jnp.float32) + b3_ref[...]
    out_ref[...] = out.astype(out_ref.dtype)


def _round_up(n, m):
    return ((n + m - 1) // m) * m


def critic_forward(x, a, params, *, tile_b=TILE_B):
    """x: (B, state_dim), a: (B, action_dim) -> (B, action_dim) float32."""
    B = x.shape[0]
    x = x.astype(jnp.float32)
    a = a.astype(jnp.float32)

    # Choose the batch tile; pad B so the grid divides evenly (padded rows are
    # zeros and are sliced off at the end).
    if B <= tile_b:
        tb = max(8, _round_up(B, 8))
        Bp = tb
    else:
        tb = tile_b
        Bp = _round_up(B, tb)
    if Bp != B:
        x = jnp.pad(x, ((0, Bp - B), (0, 0)))
        a = jnp.pad(a, ((0, Bp - B), (0, 0)))

    (w0, b0), (w1, b1), (w2, b2), (w3, b3) = params
    # Layer-0 weights stay f32 (VPU); hidden/output weights stored bf16 at rest
    # (halves their VMEM footprint, MXU fast path). Biases stay f32.
    w0 = w0.astype(jnp.float32)
    w1 = w1.astype(jnp.bfloat16)
    w2 = w2.astype(jnp.bfloat16)
    w3 = w3.astype(jnp.bfloat16)
    b0, b1, b2, b3 = (b.astype(jnp.float32) for b in (b0, b1, b2, b3))

    grid = (Bp // tb,)

    def tiled(shape):       # batch-tiled operand
        return pl.BlockSpec(shape, lambda i: (i, 0))

    def resident(shape):    # same block every step -> stays in VMEM, no re-DMA
        return pl.BlockSpec(shape, lambda i: (0, 0))

    out = pl.pallas_call(
        critic_kernel,
        out_shape=jax.ShapeDtypeStruct((Bp, OUT_DIM), jnp.float32),
        grid=grid,
        in_specs=[
            tiled((tb, STATE_DIM)),
            tiled((tb, ACTION_DIM)),
            resident(w0.shape), resident(b0.shape),
            resident(w1.shape), resident(b1.shape),
            resident(w2.shape), resident(b2.shape),
            resident(w3.shape), resident(b3.shape),
        ],
        out_specs=tiled((tb, OUT_DIM)),
        compiler_params=pltpu.CompilerParams(
            dimension_semantics=("parallel",),       # megacore sharding on v7x
            vmem_limit_bytes=16 * 1024 * 1024,       # right-sized (weights ~0.5 MiB
        ),                                           # + a few activation tiles)
    )(x, a, w0, b0, w1, b1, w2, b2, w3, b3)

    return out[:B]


def init_params(key):
    """Deterministic init matching NeuralNetwork(4, 1, 256, 2) layer shapes.

    Weights are stored as (in_features, out_features) (transposed vs. PyTorch)
    so the kernel computes h @ W + b directly.
    """
    dims = [(IN_DIM, HIDDEN), (HIDDEN, HIDDEN), (HIDDEN, HIDDEN), (HIDDEN, OUT_DIM)]
    params = []
    for fan_in, fan_out in dims:
        key, kw, kb = jax.random.split(key, 3)
        bound = 1.0 / jnp.sqrt(fan_in)   # torch.nn.Linear default scale
        w = jax.random.uniform(kw, (fan_in, fan_out), jnp.float32, -bound, bound)
        b = jax.random.uniform(kb, (1, fan_out), jnp.float32, -bound, bound)
        params.append((w, b))
    return params


def reference_forward(x, a, params, *, mixed=False):
    """Pure-JAX reference.  mixed=True mirrors the kernel's mixed precision."""
    xa = jnp.concatenate([x, a], axis=-1).astype(jnp.float32)
    (w0, b0) = params[0]
    if mixed:
        h = b0
        for k in range(IN_DIM):
            h = h + xa[:, k:k + 1] * w0[k:k + 1, :]
    else:
        h = jnp.dot(xa, w0, preferred_element_type=jnp.float32) + b0
    h = jnp.where(h > 0, h, NEG_SLOPE * h)
    for i, (w, b) in enumerate(params[1:]):
        if mixed:
            h = jnp.dot(h.astype(jnp.bfloat16), w.astype(jnp.bfloat16),
                        preferred_element_type=jnp.float32) + b
        else:
            h = jnp.dot(h, w, preferred_element_type=jnp.float32) + b
        if i < len(params) - 2:
            h = jnp.where(h > 0, h, NEG_SLOPE * h)
    return h


if __name__ == "__main__":
    key = jax.random.PRNGKey(0)
    kp, kx, ka = jax.random.split(key, 3)

    params = init_params(kp)

    # Small smoke test (single grid step).
    B = 8
    x = jax.random.normal(kx, (B, STATE_DIM), jnp.float32)
    a = jax.random.normal(ka, (B, ACTION_DIM), jnp.float32)

    out = jax.block_until_ready(critic_forward(x, a, params))
    assert out.shape == (B, OUT_DIM)

    ref_mixed = reference_forward(x, a, params, mixed=True)   # matches kernel math
    ref_f32 = reference_forward(x, a, params, mixed=False)    # full-f32 module math
    assert jnp.allclose(out, ref_mixed, atol=2e-3, rtol=2e-3), (out, ref_mixed)
    assert jnp.allclose(out, ref_f32, atol=3e-2, rtol=3e-2), (out, ref_f32)

    # Multi-tile test: exercises the batch grid + padding path (grid=(2,)).
    kx2, ka2 = jax.random.split(jax.random.PRNGKey(1))
    B2 = 600
    x2 = jax.random.normal(kx2, (B2, STATE_DIM), jnp.float32)
    a2 = jax.random.normal(ka2, (B2, ACTION_DIM), jnp.float32)
    out2 = jax.block_until_ready(critic_forward(x2, a2, params))
    ref2 = reference_forward(x2, a2, params, mixed=True)
    assert out2.shape == (B2, OUT_DIM)
    assert jnp.allclose(out2, ref2, atol=2e-3, rtol=2e-3)

    print("KERNEL_OK")
</pallas_src>

<mosaic_0001>
module attributes {stable_mosaic.version = 11 : i64} {
  func.func @critic_kernel(%arg0: i32, %arg1: memref<8x3xf32, #tpu.memory_space<vmem>>, %arg2: memref<8x1xf32, #tpu.memory_space<vmem>>, %arg3: memref<4x256xf32, #tpu.memory_space<vmem>>, %arg4: memref<1x256xf32, #tpu.memory_space<vmem>>, %arg5: memref<256x256xbf16, #tpu.memory_space<vmem>>, %arg6: memref<1x256xf32, #tpu.memory_space<vmem>>, %arg7: memref<256x256xbf16, #tpu.memory_space<vmem>>, %arg8: memref<1x256xf32, #tpu.memory_space<vmem>>, %arg9: memref<256x1xbf16, #tpu.memory_space<vmem>>, %arg10: memref<1x1xf32, #tpu.memory_space<vmem>>, %arg11: memref<8x1xf32, #tpu.memory_space<vmem>>) attributes {dimension_semantics = [#tpu.dimension_semantics<parallel>], iteration_bounds = array<i64: 1>, scalar_prefetch = 0 : i64, scratch_operands = 0 : i64, tpu.core_type = #tpu.core_type<tc>, window_params = [{transform_indices = @transform_0, window_bounds = array<i64: 8, 3>}, {transform_indices = @transform_1, window_bounds = array<i64: 8, 1>}, {pipeline_mode = #tpu.pipeline_mode<synchronous>, transform_indices = @transform_2, window_bounds = array<i64: 4, 256>}, {pipeline_mode = #tpu.pipeline_mode<synchronous>, transform_indices = @transform_3, window_bounds = array<i64: 1, 256>}, {pipeline_mode = #tpu.pipeline_mode<synchronous>, transform_indices = @transform_4, window_bounds = array<i64: 256, 256>}, {pipeline_mode = #tpu.pipeline_mode<synchronous>, transform_indices = @transform_5, window_bounds = array<i64: 1, 256>}, {pipeline_mode = #tpu.pipeline_mode<synchronous>, transform_indices = @transform_6, window_bounds = array<i64: 256, 256>}, {pipeline_mode = #tpu.pipeline_mode<synchronous>, transform_indices = @transform_7, window_bounds = array<i64: 1, 256>}, {pipeline_mode = #tpu.pipeline_mode<synchronous>, transform_indices = @transform_8, window_bounds = array<i64: 256, 1>}, {pipeline_mode = #tpu.pipeline_mode<synchronous>, transform_indices = @transform_9, window_bounds = array<i64: 1, 1>}, {transform_indices = @transform_10, window_bounds = array<i64: 8, 1>}]} {
    %c0 = arith.constant 0 : index
    %c0_0 = arith.constant 0 : index
    %0 = vector.load %arg1[%c0, %c0_0] : memref<8x3xf32, #tpu.memory_space<vmem>>, vector<8x3xf32>
    %c0_1 = arith.constant 0 : index
    %c0_2 = arith.constant 0 : index
    %1 = vector.load %arg2[%c0_1, %c0_2] : memref<8x1xf32, #tpu.memory_space<vmem>>, vector<8x1xf32>
    %c0_3 = arith.constant 0 : index
    %c0_4 = arith.constant 0 : index
    %2 = vector.load %arg3[%c0_3, %c0_4] : memref<4x256xf32, #tpu.memory_space<vmem>>, vector<4x256xf32>
    %c0_5 = arith.constant 0 : index
    %c0_6 = arith.constant 0 : index
    %3 = vector.load %arg4[%c0_5, %c0_6] : memref<1x256xf32, #tpu.memory_space<vmem>>, vector<1x256xf32>
    %4 = vector.extract_strided_slice %0 {offsets = [0, 0], sizes = [8, 1], strides = [1, 1]} : vector<8x3xf32> to vector<8x1xf32>
    %5 = vector.extract_strided_slice %2 {offsets = [0, 0], sizes = [1, 256], strides = [1, 1]} : vector<4x256xf32> to vector<1x256xf32>
    %6 = vector.broadcast %4 : vector<8x1xf32> to vector<8x256xf32>
    %7 = vector.broadcast %5 : vector<1x256xf32> to vector<8x256xf32>
    %8 = arith.mulf %6, %7 : vector<8x256xf32>
    %9 = vector.broadcast %3 : vector<1x256xf32> to vector<8x256xf32>
    %10 = arith.addf %9, %8 : vector<8x256xf32>
    %11 = vector.extract_strided_slice %0 {offsets = [0, 1], sizes = [8, 1], strides = [1, 1]} : vector<8x3xf32> to vector<8x1xf32>
    %12 = vector.extract_strided_slice %2 {offsets = [1, 0], sizes = [1, 256], strides = [1, 1]} : vector<4x256xf32> to vector<1x256xf32>
    %13 = vector.broadcast %11 : vector<8x1xf32> to vector<8x256xf32>
    %14 = vector.broadcast %12 : vector<1x256xf32> to vector<8x256xf32>
    %15 = arith.mulf %13, %14 : vector<8x256xf32>
    %16 = arith.addf %10, %15 : vector<8x256xf32>
    %17 = vector.extract_strided_slice %0 {offsets = [0, 2], sizes = [8, 1], strides = [1, 1]} : vector<8x3xf32> to vector<8x1xf32>
    %18 = vector.extract_strided_slice %2 {offsets = [2, 0], sizes = [1, 256], strides = [1, 1]} : vector<4x256xf32> to vector<1x256xf32>
    %19 = vector.broadcast %17 : vector<8x1xf32> to vector<8x256xf32>
    %20 = vector.broadcast %18 : vector<1x256xf32> to vector<8x256xf32>
    %21 = arith.mulf %19, %20 : vector<8x256xf32>
    %22 = arith.addf %16, %21 : vector<8x256xf32>
    %23 = vector.extract_strided_slice %2 {offsets = [3, 0], sizes = [1, 256], strides = [1, 1]} : vector<4x256xf32> to vector<1x256xf32>
    %24 = vector.broadcast %1 : vector<8x1xf32> to vector<8x256xf32>
    %25 = vector.broadcast %23 : vector<1x256xf32> to vector<8x256xf32>
    %26 = arith.mulf %24, %25 : vector<8x256xf32>
    %27 = arith.addf %22, %26 : vector<8x256xf32>
    %cst = arith.constant 0.000000e+00 : f32
    %28 = vector.broadcast %cst : f32 to vector<8x256xf32>
    %29 = arith.cmpf ogt, %27, %28 : vector<8x256xf32>
    %cst_7 = arith.constant 0.00999999977 : f32
    %30 = vector.broadcast %cst_7 : f32 to vector<8x256xf32>
    %31 = arith.mulf %30, %27 : vector<8x256xf32>
    %32 = arith.select %29, %27, %31 : vector<8x256xi1>, vector<8x256xf32>
    %33 = arith.truncf %32 : vector<8x256xf32> to vector<8x256xbf16>
    %c0_8 = arith.constant 0 : index
    %c0_9 = arith.constant 0 : index
    %34 = vector.load %arg5[%c0_8, %c0_9] : memref<256x256xbf16, #tpu.memory_space<vmem>>, vector<256x256xbf16>
    %cst_10 = arith.constant dense<0.000000e+00> : vector<8x256xf32>
    %35 = tpu.matmul %33, %34, %cst_10 {dimension_numbers = #tpu.dot_dimension_numbers<[1], [0], [0], [1], [0, 0, 1, 1], [], []>} : vector<8x256xbf16>, vector<256x256xbf16>, vector<8x256xf32> -> vector<8x256xf32>
    %c0_11 = arith.constant 0 : index
    %c0_12 = arith.constant 0 : index
    %36 = vector.load %arg6[%c0_11, %c0_12] : memref<1x256xf32, #tpu.memory_space<vmem>>, vector<1x256xf32>
    %37 = vector.broadcast %36 : vector<1x256xf32> to vector<8x256xf32>
    %38 = arith.addf %35, %37 : vector<8x256xf32>
    %cst_13 = arith.constant 0.000000e+00 : f32
    %39 = vector.broadcast %cst_13 : f32 to vector<8x256xf32>
    %40 = arith.cmpf ogt, %38, %39 : vector<8x256xf32>
    %cst_14 = arith.constant 0.00999999977 : f32
    %41 = vector.broadcast %cst_14 : f32 to vector<8x256xf32>
    %42 = arith.mulf %41, %38 : vector<8x256xf32>
    %43 = arith.select %40, %38, %42 : vector<8x256xi1>, vector<8x256xf32>
    %44 = arith.truncf %43 : vector<8x256xf32> to vector<8x256xbf16>
    %c0_15 = arith.constant 0 : index
    %c0_16 = arith.constant 0 : index
    %45 = vector.load %arg7[%c0_15, %c0_16] : memref<256x256xbf16, #tpu.memory_space<vmem>>, vector<256x256xbf16>
    %cst_17 = arith.constant dense<0.000000e+00> : vector<8x256xf32>
    %46 = tpu.matmul %44, %45, %cst_17 {dimension_numbers = #tpu.dot_dimension_numbers<[1], [0], [0], [1], [0, 0, 1, 1], [], []>} : vector<8x256xbf16>, vector<256x256xbf16>, vector<8x256xf32> -> vector<8x256xf32>
    %c0_18 = arith.constant 0 : index
    %c0_19 = arith.constant 0 : index
    %47 = vector.load %arg8[%c0_18, %c0_19] : memref<1x256xf32, #tpu.memory_space<vmem>>, vector<1x256xf32>
    %48 = vector.broadcast %47 : vector<1x256xf32> to vector<8x256xf32>
    %49 = arith.addf %46, %48 : vector<8x256xf32>
    %cst_20 = arith.constant 0.000000e+00 : f32
    %50 = vector.broadcast %cst_20 : f32 to vector<8x256xf32>
    %51 = arith.cmpf ogt, %49, %50 : vector<8x256xf32>
    %cst_21 = arith.constant 0.00999999977 : f32
    %52 = vector.broadcast %cst_21 : f32 to vector<8x256xf32>
    %53 = arith.mulf %52, %49 : vector<8x256xf32>
    %54 = arith.select %51, %49, %53 : vector<8x256xi1>, vector<8x256xf32>
    %55 = arith.truncf %54 : vector<8x256xf32> to vector<8x256xbf16>
    %c0_22 = arith.constant 0 : index
    %c0_23 = arith.constant 0 : index
    %56 = vector.load %arg9[%c0_22, %c0_23] : memref<256x1xbf16, #tpu.memory_space<vmem>>, vector<256x1xbf16>
    %cst_24 = arith.constant dense<0.000000e+00> : vector<8x1xf32>
    %57 = tpu.matmul %55, %56, %cst_24 {dimension_numbers = #tpu.dot_dimension_numbers<[1], [0], [0], [1], [0, 0, 1, 1], [], []>} : vector<8x256xbf16>, vector<256x1xbf16>, vector<8x1xf32> -> vector<8x1xf32>
    %c0_25 = arith.constant 0 : index
    %c0_26 = arith.constant 0 : index
    %58 = vector.load %arg10[%c0_25, %c0_26] : memref<1x1xf32, #tpu.memory_space<vmem>>, vector<1x1xf32>
    %59 = vector.broadcast %58 : vector<1x1xf32> to vector<8x1xf32>
    %60 = arith.addf %57, %59 : vector<8x1xf32>
    %c0_27 = arith.constant 0 : index
    %c0_28 = arith.constant 0 : index
    %61 = vector.load %arg11[%c0_27, %c0_28] : memref<8x1xf32, #tpu.memory_space<vmem>>, vector<8x1xf32>
    tpu.vector_store %arg11[%c0_27, %c0_28], %60 {strides = array<i32>} : memref<8x1xf32, #tpu.memory_space<vmem>>, vector<8x1xf32>,
    return
  }
  func.func @transform_0(%arg0: i32) -> (i32, i32) {
    %c0_i32 = arith.constant 0 : i32
    %c0_i32_0 = arith.constant 0 : i32
    return %arg0, %c0_i32 : i32, i32
  }
  func.func @transform_1(%arg0: i32) -> (i32, i32) {
    %c0_i32 = arith.constant 0 : i32
    %c0_i32_0 = arith.constant 0 : i32
    return %arg0, %c0_i32 : i32, i32
  }
  func.func @transform_2(%arg0: i32) -> (i32, i32) {
    %c0_i32 = arith.constant 0 : i32
    %c0_i32_0 = arith.constant 0 : i32
    %c0_i32_1 = arith.constant 0 : i32
    return %c0_i32, %c0_i32_0 : i32, i32
  }
  func.func @transform_3(%arg0: i32) -> (i32, i32) {
    %c0_i32 = arith.constant 0 : i32
    %c0_i32_0 = arith.constant 0 : i32
    %c0_i32_1 = arith.constant 0 : i32
    return %c0_i32, %c0_i32_0 : i32, i32
  }
  func.func @transform_4(%arg0: i32) -> (i32, i32) {
    %c0_i32 = arith.constant 0 : i32
    %c0_i32_0 = arith.constant 0 : i32
    %c0_i32_1 = arith.constant 0 : i32
    return %c0_i32, %c0_i32_0 : i32, i32
  }
  func.func @transform_5(%arg0: i32) -> (i32, i32) {
    %c0_i32 = arith.constant 0 : i32
    %c0_i32_0 = arith.constant 0 : i32
    %c0_i32_1 = arith.constant 0 : i32
    return %c0_i32, %c0_i32_0 : i32, i32
  }
  func.func @transform_6(%arg0: i32) -> (i32, i32) {
    %c0_i32 = arith.constant 0 : i32
    %c0_i32_0 = arith.constant 0 : i32
    %c0_i32_1 = arith.constant 0 : i32
    return %c0_i32, %c0_i32_0 : i32, i32
  }
  func.func @transform_7(%arg0: i32) -> (i32, i32) {
    %c0_i32 = arith.constant 0 : i32
    %c0_i32_0 = arith.constant 0 : i32
    %c0_i32_1 = arith.constant 0 : i32
    return %c0_i32, %c0_i32_0 : i32, i32
  }
  func.func @transform_8(%arg0: i32) -> (i32, i32) {
    %c0_i32 = arith.constant 0 : i32
    %c0_i32_0 = arith.constant 0 : i32
    %c0_i32_1 = arith.constant 0 : i32
    return %c0_i32, %c0_i32_0 : i32, i32
  }
  func.func @transform_9(%arg0: i32) -> (i32, i32) {
    %c0_i32 = arith.constant 0 : i32
    %c0_i32_0 = arith.constant 0 : i32
    %c0_i32_1 = arith.constant 0 : i32
    return %c0_i32, %c0_i32_0 : i32, i32
  }
  func.func @transform_10(%arg0: i32) -> (i32, i32) {
    %c0_i32 = arith.constant 0 : i32
    %c0_i32_0 = arith.constant 0 : i32
    return %arg0, %c0_i32 : i32, i32
  }
}

</mosaic_0001>

<llo_original>
// kernel: tpu_custom_call.1
$region0: #{tpu_custom_call.1}
  #allocation0 [shape = 'u32[]', space=smem, size = 0x4, offset = 0x4, fixed_abs, tag = 'smem constant byte address 0x4 - core index']
  #allocation1 [shape = 'u32[72,128]{1,0:T(1,128)}', space=vmem, size = 0x9000, scoped, tag = 'internal scratch']
  #allocation2 [shape = 'f32[1,1]{1,0:T(1,128)S(1)}', space=vmem, size = 0x200, scoped, tag = 'scoped memory for tpu_custom_call.1']
  %s0 = inlined_call_operand.vmem [shape: f32[8,3], index: 0, kind: input, shape index: {}]
  %s1 = inlined_call_operand.vmem [shape: f32[8,1], index: 1, kind: input, shape index: {}]
  %s2 = inlined_call_operand.vmem [shape: f32[4,256], index: 2, kind: input, shape index: {}]
  %s3 = inlined_call_operand.vmem [shape: f32[1,256], index: 3, kind: input, shape index: {}]
  %s4 = inlined_call_operand.hbm [shape: bf16[256,256], index: 4, kind: input, shape index: {}]
  %s5 = inlined_call_operand.vmem [shape: f32[1,256], index: 5, kind: input, shape index: {}]
  %s6 = inlined_call_operand.hbm [shape: bf16[256,256], index: 6, kind: input, shape index: {}]
  %s7 = inlined_call_operand.vmem [shape: f32[1,256], index: 7, kind: input, shape index: {}]
  %s8 = inlined_call_operand.vmem [shape: bf16[256,1], index: 8, kind: input, shape index: {}]
  %s9 = inlined_call_operand.<no memory space> [shape: f32[1,1], index: 9, kind: input, shape index: {}]
  %s10 = inlined_call_operand.vmem [shape: f32[8,1], index: 10, kind: output, shape index: {}]
  %s11 = sld [smem:[#allocation0]]
  $region58: #{tpu_custom_call.1} parent=0
    _
  %s13 = ssub.s32 1, %s11
  %s14 = scalar_select 0, %s13, %s11
  %v15 = vstv %s9
  %16 = vst [vmem:[#allocation2] sm:$0x1] %v15
  $region1: #{tpu_custom_call.1} parent=0
    #allocation3 [shape = 'u8[131072]{0}', space=vmem, size = 0x20000, scoped, tag = 'input window, operand 4, single buffered']
    #allocation4 [shape = 's32[1]{0}', space=sflag, size = 0x4, scoped, tag = 'scoped memory for tpu_custom_call.1']
    #allocation5 [shape = 'u8[131072]{0}', space=vmem, size = 0x20000, scoped, tag = 'input window, operand 6, single buffered']
    #allocation6 [shape = 's32[1]{0}', space=sflag, size = 0x4, scoped, tag = 'scoped memory for tpu_custom_call.1']
    %17 = vsyncpa [#allocation4], 0
    %18 = vsyncpa [#allocation6], 0
    // Predicated region
    $region2: #{tpu_custom_call.1} parent=1 // pred_check
      _
    $region3: #{tpu_custom_call.1} parent=1 // pred_check_branch
      %20 = sbr.rel (0) target = $region5
    $region4: #{tpu_custom_call.1} parent=1 // pred_region
      _
    $region5: #{tpu_custom_call.1} parent=1 // pred_fallthru
      _
    // Predicated region
    $region6: #{tpu_custom_call.1} parent=1 // pred_check
      _
    $region7: #{tpu_custom_call.1} parent=1 // pred_check_branch
      %22 = sbr.rel (0) target = $region9
    $region8: #{tpu_custom_call.1} parent=1 // pred_region
      _
    $region9: #{tpu_custom_call.1} parent=1 // pred_fallthru
      _
    // Predicated region
    $region10: #{tpu_custom_call.1} parent=1 // pred_check
      _
    $region11: #{tpu_custom_call.1} parent=1 // pred_check_branch
      %24 = sbr.rel (0) target = $region13
    $region12: #{tpu_custom_call.1} parent=1 // pred_region
      _
    $region13: #{tpu_custom_call.1} parent=1 // pred_fallthru
      _
    // Predicated region
    $region14: #{tpu_custom_call.1} parent=1 // pred_check
      _
    $region15: #{tpu_custom_call.1} parent=1 // pred_check_branch
      %26 = sbr.rel (0) target = $region17
    $region16: #{tpu_custom_call.1} parent=1 // pred_region
      _
    $region17: #{tpu_custom_call.1} parent=1 // pred_fallthru
      _
    // Predicated region
    $region18: #{tpu_custom_call.1} parent=1 // pred_check
      _
    $region19: #{tpu_custom_call.1} parent=1 // pred_check_branch
      %28 = sbr.rel (0) target = $region21
    $region20: #{tpu_custom_call.1} parent=1 // pred_region
      %30 = vsyncadd [#allocation4], 0
      %s31 = sshll.u32 %s4, 4
      %s32 = int_to_ptr.hbm [resolvable:$true] %s31
      %s33 = sshll.u32 [#allocation3], 4
      %s34 = int_to_ptr.vmem [resolvable:$true] %s33
      %39 = dma.hbm_to_vmem [thread:$0]  %s32, 4096, %s34, [#allocation4], 128, 128, 8
    $region21: #{tpu_custom_call.1} parent=1 // pred_fallthru
      _
    // Predicated region
    $region22: #{tpu_custom_call.1} parent=1 // pred_check
      _
    $region23: #{tpu_custom_call.1} parent=1 // pred_check_branch
      %41 = sbr.rel (0) target = $region25
    $region24: #{tpu_custom_call.1} parent=1 // pred_region
      _
    $region25: #{tpu_custom_call.1} parent=1 // pred_fallthru
      _
    // Predicated region
    $region26: #{tpu_custom_call.1} parent=1 // pred_check
      _
    $region27: #{tpu_custom_call.1} parent=1 // pred_check_branch
      %43 = sbr.rel (0) target = $region29
    $region28: #{tpu_custom_call.1} parent=1 // pred_region
      %45 = vsyncadd [#allocation6], 0
      %s46 = sshll.u32 %s6, 4
      %s47 = int_to_ptr.hbm [resolvable:$true] %s46
      %s48 = sshll.u32 [#allocation5], 4
      %s49 = int_to_ptr.vmem [resolvable:$true] %s48
      %54 = dma.hbm_to_vmem [thread:$0]  %s47, 4096, %s49, [#allocation6], 128, 128, 8
    $region29: #{tpu_custom_call.1} parent=1 // pred_fallthru
      _
    // Predicated region
    $region30: #{tpu_custom_call.1} parent=1 // pred_check
      _
    $region31: #{tpu_custom_call.1} parent=1 // pred_check_branch
      %56 = sbr.rel (0) target = $region33
    $region32: #{tpu_custom_call.1} parent=1 // pred_region
      _
    $region33: #{tpu_custom_call.1} parent=1 // pred_fallthru
      _
    // Predicated region
    $region34: #{tpu_custom_call.1} parent=1 // pred_check
      _
    $region35: #{tpu_custom_call.1} parent=1 // pred_check_branch
      %58 = sbr.rel (0) target = $region37
    $region36: #{tpu_custom_call.1} parent=1 // pred_region
      _
    $region37: #{tpu_custom_call.1} parent=1 // pred_fallthru
      _
    // Predicated region
    $region38: #{tpu_custom_call.1} parent=1 // pred_check
      _
    $region39: #{tpu_custom_call.1} parent=1 // pred_check_branch
      %60 = sbr.rel (0) target = $region41
    $region40: #{tpu_custom_call.1} parent=1 // pred_region
      _
    $region41: #{tpu_custom_call.1} parent=1 // pred_fallthru
      _
    // Predicated region
    $region42: #{tpu_custom_call.1} parent=1 // pred_check
      _
    $region43: #{tpu_custom_call.1} parent=1 // pred_check_branch
      %62 = sbr.rel (0) target = $region45
    $region44: #{tpu_custom_call.1} parent=1 // pred_region
      %64 = dma.done [#allocation4], 4096
    $region45: #{tpu_custom_call.1} parent=1 // pred_fallthru
      _
    // Predicated region
    $region46: #{tpu_custom_call.1} parent=1 // pred_check
      _
    $region47: #{tpu_custom_call.1} parent=1 // pred_check_branch
      %66 = sbr.rel (0) target = $region49
    $region48: #{tpu_custom_call.1} parent=1 // pred_region
      %68 = dma.done [#allocation6], 4096
    $region49: #{tpu_custom_call.1} parent=1 // pred_fallthru
      _
    %v69 = vld [vmem:[%s0] sm:$0xff]
    %v70 = vld [vmem:[%s1] sm:$0xff]
    %v71 = vld [vmem:[%s2] sm:$0xff]
    %v72 = vld [vmem:[%s3] sm:$0x3]
    %74 = vset.pattern.permute.xlu0 0
    %75 = vperm.xlu0 %74, %v69
    %v76 = vpop.permute.xlu0 %75
    %v79 = vperm.slane %v71, 0
    %v80 = vperm.slane %v71, 4
    %v83 = vperm.slane %v79, 0
    %v84 = vperm.slane %v80, 0
    %v85 = vmul.f32 %v76, %v83
    %v86 = vmul.f32 %v76, %v84
    %v88 = vperm.slane %v72, 0
    %v89 = vperm.slane %v72, 1
    %v92 = vadd.f32 %v88, %v85
    %v93 = vadd.f32 %v89, %v86
    %94 = vset.pattern.permute.xlu0 1
    %95 = vperm.xlu0 %94, %v69
    %v96 = vpop.permute.xlu0 %95
    %v98 = vperm.slane %v71, 1
    %v99 = vperm.slane %v71, 5
    %v102 = vperm.slane %v98, 1
    %v103 = vperm.slane %v99, 1
    %v104 = vmul.f32 %v96, %v102
    %v105 = vmul.f32 %v96, %v103
    %v106 = vadd.f32 %v92, %v104
    %v107 = vadd.f32 %v93, %v105
    %108 = vset.pattern.permute.xlu0 2
    %109 = vperm.xlu0 %108, %v69
    %v110 = vpop.permute.xlu0 %109
    %v112 = vperm.slane %v71, 2
    %v113 = vperm.slane %v71, 6
    %v116 = vperm.slane %v112, 2
    %v117 = vperm.slane %v113, 2
    %v118 = vmul.f32 %v110, %v116
    %v119 = vmul.f32 %v110, %v117
    %v120 = vadd.f32 %v106, %v118
    %v121 = vadd.f32 %v107, %v119
    %123 = vset.pattern.permute.xlu0 0
    %124 = vperm.xlu0 %123, %v70
    %v125 = vpop.permute.xlu0 %124
    %v127 = vperm.slane %v71, 3
    %v128 = vperm.slane %v71, 7
    %v131 = vperm.slane %v127, 3
    %v132 = vperm.slane %v128, 3
    %v133 = vmul.f32 %v125, %v131
    %v134 = vmul.f32 %v125, %v132
    %v135 = vadd.f32 %v120, %v133
    %v136 = vadd.f32 %v121, %v134
    %vm137 = vcmp.gt.f32.partialorder %v135, 0.0
    %vm138 = vcmp.gt.f32.partialorder %v136, 0.0
    %v139 = vmul.f32 %v135, 0.01
    %v140 = vmul.f32 %v136, 0.01
    %v141 = vsel %vm137, %v135, %v139
    %v142 = vsel %vm138, %v136, %v140
    %v143 = vpack.c.bf16 %v141, %v141
    %v144 = vpack.c.bf16 %v142, %v142
    %v145 = vld [vmem:[#allocation3] sm:$0xff]
    %v146 = vld [vmem:[#allocation3 + $0x8] sm:$0xff]
    %v147 = vld [vmem:[#allocation3 + $0x10] sm:$0xff]
    %v148 = vld [vmem:[#allocation3 + $0x18] sm:$0xff]
    %v149 = vld [vmem:[#allocation3 + $0x20] sm:$0xff]
    %v150 = vld [vmem:[#allocation3 + $0x28] sm:$0xff]
    %v151 = vld [vmem:[#allocation3 + $0x30] sm:$0xff]
    %v152 = vld [vmem:[#allocation3 + $0x38] sm:$0xff]
    %v153 = vld [vmem:[#allocation3 + $0x40] sm:$0xff]
    %v154 = vld [vmem:[#allocation3 + $0x48] sm:$0xff]
    %v155 = vld [vmem:[#allocation3 + $0x50] sm:$0xff]
    %v156 = vld [vmem:[#allocation3 + $0x58] sm:$0xff]
    %v157 = vld [vmem:[#allocation3 + $0x60] sm:$0xff]
    %v158 = vld [vmem:[#allocation3 + $0x68] sm:$0xff]
    %v159 = vld [vmem:[#allocation3 + $0x70] sm:$0xff]
    %v160 = vld [vmem:[#allocation3 + $0x78] sm:$0xff]
    %v161 = vld [vmem:[#allocation3 + $0x80] sm:$0xff]
    %v162 = vld [vmem:[#allocation3 + $0x88] sm:$0xff]
    %v163 = vld [vmem:[#allocation3 + $0x90] sm:$0xff]
    %v164 = vld [vmem:[#allocation3 + $0x98] sm:$0xff]
    %v165 = vld [vmem:[#allocation3 + $0xa0] sm:$0xff]
    %v166 = vld [vmem:[#allocation3 + $0xa8] sm:$0xff]
    %v167 = vld [vmem:[#allocation3 + $0xb0] sm:$0xff]
    %v168 = vld [vmem:[#allocation3 + $0xb8] sm:$0xff]
    %v169 = vld [vmem:[#allocation3 + $0xc0] sm:$0xff]
    %v170 = vld [vmem:[#allocation3 + $0xc8] sm:$0xff]
    %v171 = vld [vmem:[#allocation3 + $0xd0] sm:$0xff]
    %v172 = vld [vmem:[#allocation3 + $0xd8] sm:$0xff]
    %v173 = vld [vmem:[#allocation3 + $0xe0] sm:$0xff]
    %v174 = vld [vmem:[#allocation3 + $0xe8] sm:$0xff]
    %v175 = vld [vmem:[#allocation3 + $0xf0] sm:$0xff]
    %v176 = vld [vmem:[#allocation3 + $0xf8] sm:$0xff]
    %v177 = vld [vmem:[%s5] sm:$0x3]
    %v179 = vperm.slane %v177, 0
    %v180 = vperm.slane %v177, 1
    %v215 = vunpack.c.l.b16 %v145
    %v216 = vunpack.c.h.b16 %v145
    %v217 = vunpack.c.l.b16 %v146
    %v218 = vunpack.c.h.b16 %v146
    %v219 = vunpack.c.l.b16 %v147
    %v220 = vunpack.c.h.b16 %v147
    %v221 = vunpack.c.l.b16 %v148
    %v222 = vunpack.c.h.b16 %v148
    %v223 = vunpack.c.l.b16 %v149
    %v224 = vunpack.c.h.b16 %v149
    %v225 = vunpack.c.l.b16 %v150
    %v226 = vunpack.c.h.b16 %v150
    %v227 = vunpack.c.l.b16 %v151
    %v228 = vunpack.c.h.b16 %v151
    %v229 = vunpack.c.l.b16 %v152
    %v230 = vunpack.c.h.b16 %v152
    %v231 = vunpack.c.l.b16 %v153
    %v232 = vunpack.c.h.b16 %v153
    %v233 = vunpack.c.l.b16 %v154
    %v234 = vunpack.c.h.b16 %v154
    %v235 = vunpack.c.l.b16 %v155
    %v236 = vunpack.c.h.b16 %v155
    %v237 = vunpack.c.l.b16 %v156
    %v238 = vunpack.c.h.b16 %v156
    %v239 = vunpack.c.l.b16 %v157
    %v240 = vunpack.c.h.b16 %v157
    %v241 = vunpack.c.l.b16 %v158
    %v242 = vunpack.c.h.b16 %v158
    %v243 = vunpack.c.l.b16 %v159
    %v244 = vunpack.c.h.b16 %v159
    %v245 = vunpack.c.l.b16 %v160
    %v246 = vunpack.c.h.b16 %v160
    %v247 = vunpack.c.l.b16 %v161
    %v248 = vunpack.c.h.b16 %v161
    %v249 = vunpack.c.l.b16 %v162
    %v250 = vunpack.c.h.b16 %v162
    %v251 = vunpack.c.l.b16 %v163
    %v252 = vunpack.c.h.b16 %v163
    %v253 = vunpack.c.l.b16 %v164
    %v254 = vunpack.c.h.b16 %v164
    %v255 = vunpack.c.l.b16 %v165
    %v256 = vunpack.c.h.b16 %v165
    %v257 = vunpack.c.l.b16 %v166
    %v258 = vunpack.c.h.b16 %v166
    %v259 = vunpack.c.l.b16 %v167
    %v260 = vunpack.c.h.b16 %v167
    %v261 = vunpack.c.l.b16 %v168
    %v262 = vunpack.c.h.b16 %v168
    %v263 = vunpack.c.l.b16 %v169
    %v264 = vunpack.c.h.b16 %v169
    %v265 = vunpack.c.l.b16 %v170
    %v266 = vunpack.c.h.b16 %v170
    %v267 = vunpack.c.l.b16 %v171
    %v268 = vunpack.c.h.b16 %v171
    %v269 = vunpack.c.l.b16 %v172
    %v270 = vunpack.c.h.b16 %v172
    %v271 = vunpack.c.l.b16 %v173
    %v272 = vunpack.c.h.b16 %v173
    %v273 = vunpack.c.l.b16 %v174
    %v274 = vunpack.c.h.b16 %v174
    %v275 = vunpack.c.l.b16 %v175
    %v276 = vunpack.c.h.b16 %v175
    %v277 = vunpack.c.l.b16 %v176
    %v278 = vunpack.c.h.b16 %v176
    %v279 = vpack.c.b16 %v217, %v215
    %v280 = vpack.c.b16 %v218, %v216
    %v281 = vpack.c.b16 %v221, %v219
    %v282 = vpack.c.b16 %v222, %v220
    %v283 = vpack.c.b16 %v225, %v223
    %v284 = vpack.c.b16 %v226, %v224
    %v285 = vpack.c.b16 %v229, %v227
    %v286 = vpack.c.b16 %v230, %v228
    %v287 = vpack.c.b16 %v233, %v231
    %v288 = vpack.c.b16 %v234, %v232
    %v289 = vpack.c.b16 %v237, %v235
    %v290 = vpack.c.b16 %v238, %v236
    %v291 = vpack.c.b16 %v241, %v239
    %v292 = vpack.c.b16 %v242, %v240
    %v293 = vpack.c.b16 %v245, %v243
    %v294 = vpack.c.b16 %v246, %v244
    %v295 = vpack.c.b16 %v249, %v247
    %v296 = vpack.c.b16 %v250, %v248
    %v297 = vpack.c.b16 %v253, %v251
    %v298 = vpack.c.b16 %v254, %v252
    %v299 = vpack.c.b16 %v257, %v255
    %v300 = vpack.c.b16 %v258, %v256
    %v301 = vpack.c.b16 %v261, %v259
    %v302 = vpack.c.b16 %v262, %v260
    %v303 = vpack.c.b16 %v265, %v263
    %v304 = vpack.c.b16 %v266, %v264
    %v305 = vpack.c.b16 %v269, %v267
    %v306 = vpack.c.b16 %v270, %v268
    %v307 = vpack.c.b16 %v273, %v271
    %v308 = vpack.c.b16 %v274, %v272
    %v309 = vpack.c.b16 %v277, %v275
    %v310 = vpack.c.b16 %v278, %v276
    %343 = vmatpush.bf16.msra.mxu0 %v293
    %344 = vmatpush.bf16.msra.mxu0 %v291
    %345 = vmatpush.bf16.msra.mxu0 %v289
    %346 = vmatpush.bf16.msra.mxu0 %v287
    %347 = vmatpush.bf16.msra.mxu0 %v285
    %348 = vmatpush.bf16.msra.mxu0 %v283
    %349 = vmatpush.bf16.msra.mxu0 %v281
    %350 = vmatpush.bf16.msra.mxu0 %v279
    %351 = vmatmul.bf16.gmra.mxu0 %v143
    %v352 = vpop.f32.mrf.mxu0
    %v353 = vadd.f32 %v179, %v352
    %v354 = vpop.f32.mrf.mxu0
    %355 = vdwg.mxu0
    %356 = vmatpush.bf16.msra.mxu0 %v309
    %357 = vmatpush.bf16.msra.mxu0 %v307
    %358 = vmatpush.bf16.msra.mxu0 %v305
    %359 = vmatpush.bf16.msra.mxu0 %v303
    %360 = vmatpush.bf16.msra.mxu0 %v301
    %361 = vmatpush.bf16.msra.mxu0 %v299
    %362 = vmatpush.bf16.msra.mxu0 %v297
    %363 = vmatpush.bf16.msra.mxu0 %v295
    %364 = vmatmul.bf16.gmra.mxu0 %v144
    %v365 = vpop.f32.mrf.mxu0
    %v366 = vadd.f32 %v353, %v365
    %v367 = vpop.f32.mrf.mxu0
    %368 = vdwg.mxu0
    %369 = vmatpush.bf16.msra.mxu0 %v294
    %370 = vmatpush.bf16.msra.mxu0 %v292
    %371 = vmatpush.bf16.msra.mxu0 %v290
    %372 = vmatpush.bf16.msra.mxu0 %v288
    %373 = vmatpush.bf16.msra.mxu0 %v286
    %374 = vmatpush.bf16.msra.mxu0 %v284
    %375 = vmatpush.bf16.msra.mxu0 %v282
    %376 = vmatpush.bf16.msra.mxu0 %v280
    %377 = vmatmul.bf16.gmra.mxu0 %v143
    %v378 = vpop.f32.mrf.mxu0
    %v379 = vadd.f32 %v180, %v378
    %v380 = vpop.f32.mrf.mxu0
    %381 = vdwg.mxu0
    %382 = vmatpush.bf16.msra.mxu0 %v310
    %383 = vmatpush.bf16.msra.mxu0 %v308
    %384 = vmatpush.bf16.msra.mxu0 %v306
    %385 = vmatpush.bf16.msra.mxu0 %v304
    %386 = vmatpush.bf16.msra.mxu0 %v302
    %387 = vmatpush.bf16.msra.mxu0 %v300
    %388 = vmatpush.bf16.msra.mxu0 %v298
    %389 = vmatpush.bf16.msra.mxu0 %v296
    %390 = vmatmul.bf16.gmra.mxu0 %v144
    %v391 = vpop.f32.mrf.mxu0
    %v392 = vadd.f32 %v379, %v391
    %v393 = vpop.f32.mrf.mxu0
    %394 = vdwg.mxu0
    %vm395 = vcmp.gt.f32.partialorder %v366, 0.0
    %vm396 = vcmp.gt.f32.partialorder %v392, 0.0
    %v397 = vmul.f32 %v366, 0.01
    %v398 = vmul.f32 %v392, 0.01
    %v399 = vsel %vm395, %v366, %v397
    %v400 = vsel %vm396, %v392, %v398
    %v401 = vpack.c.bf16 %v399, %v399
    %v402 = vpack.c.bf16 %v400, %v400
    %v403 = vld [vmem:[#allocation5] sm:$0xff]
    %v404 = vld [vmem:[#allocation5 + $0x8] sm:$0xff]
    %v405 = vld [vmem:[#allocation5 + $0x10] sm:$0xff]
    %v406 = vld [vmem:[#allocation5 + $0x18] sm:$0xff]
    %v407 = vld [vmem:[#allocation5 + $0x20] sm:$0xff]
    %v408 = vld [vmem:[#allocation5 + $0x28] sm:$0xff]
    %v409 = vld [vmem:[#allocation5 + $0x30] sm:$0xff]
    %v410 = vld [vmem:[#allocation5 + $0x38] sm:$0xff]
    %v411 = vld [vmem:[#allocation5 + $0x40] sm:$0xff]
    %v412 = vld [vmem:[#allocation5 + $0x48] sm:$0xff]
    %v413 = vld [vmem:[#allocation5 + $0x50] sm:$0xff]
    %v414 = vld [vmem:[#allocation5 + $0x58] sm:$0xff]
    %v415 = vld [vmem:[#allocation5 + $0x60] sm:$0xff]
    %v416 = vld [vmem:[#allocation5 + $0x68] sm:$0xff]
    %v417 = vld [vmem:[#allocation5 + $0x70] sm:$0xff]
    %v418 = vld [vmem:[#allocation5 + $0x78] sm:$0xff]
    %v419 = vld [vmem:[#allocation5 + $0x80] sm:$0xff]
    %v420 = vld [vmem:[#allocation5 + $0x88] sm:$0xff]
    %v421 = vld [vmem:[#allocation5 + $0x90] sm:$0xff]
    %v422 = vld [vmem:[#allocation5 + $0x98] sm:$0xff]
    %v423 = vld [vmem:[#allocation5 + $0xa0] sm:$0xff]
    %v424 = vld [vmem:[#allocation5 + $0xa8] sm:$0xff]
    %v425 = vld [vmem:[#allocation5 + $0xb0] sm:$0xff]
    %v426 = vld [vmem:[#allocation5 + $0xb8] sm:$0xff]
    %v427 = vld [vmem:[#allocation5 + $0xc0] sm:$0xff]
    %v428 = vld [vmem:[#allocation5 + $0xc8] sm:$0xff]
    %v429 = vld [vmem:[#allocation5 + $0xd0] sm:$0xff]
    %v430 = vld [vmem:[#allocation5 + $0xd8] sm:$0xff]
    %v431 = vld [vmem:[#allocation5 + $0xe0] sm:$0xff]
    %v432 = vld [vmem:[#allocation5 + $0xe8] sm:$0xff]
    %v433 = vld [vmem:[#allocation5 + $0xf0] sm:$0xff]
    %v434 = vld [vmem:[#allocation5 + $0xf8] sm:$0xff]
    %v435 = vld [vmem:[%s7] sm:$0x3]
    %v437 = vperm.slane %v435, 0
    %v438 = vperm.slane %v435, 1
    %v473 = vunpack.c.l.b16 %v403
    %v474 = vunpack.c.h.b16 %v403
    %v475 = vunpack.c.l.b16 %v404
    %v476 = vunpack.c.h.b16 %v404
    %v477 = vunpack.c.l.b16 %v405
    %v478 = vunpack.c.h.b16 %v405
    %v479 = vunpack.c.l.b16 %v406
    %v480 = vunpack.c.h.b16 %v406
    %v481 = vunpack.c.l.b16 %v407
    %v482 = vunpack.c.h.b16 %v407
    %v483 = vunpack.c.l.b16 %v408
    %v484 = vunpack.c.h.b16 %v408
    %v485 = vunpack.c.l.b16 %v409
    %v486 = vunpack.c.h.b16 %v409
    %v487 = vunpack.c.l.b16 %v410
    %v488 = vunpack.c.h.b16 %v410
    %v489 = vunpack.c.l.b16 %v411
    %v490 = vunpack.c.h.b16 %v411
    %v491 = vunpack.c.l.b16 %v412
    %v492 = vunpack.c.h.b16 %v412
    %v493 = vunpack.c.l.b16 %v413
    %v494 = vunpack.c.h.b16 %v413
    %v495 = vunpack.c.l.b16 %v414
    %v496 = vunpack.c.h.b16 %v414
    %v497 = vunpack.c.l.b16 %v415
    %v498 = vunpack.c.h.b16 %v415
    %v499 = vunpack.c.l.b16 %v416
    %v500 = vunpack.c.h.b16 %v416
    %v501 = vunpack.c.l.b16 %v417
    %v502 = vunpack.c.h.b16 %v417
    %v503 = vunpack.c.l.b16 %v418
    %v504 = vunpack.c.h.b16 %v418
    %v505 = vunpack.c.l.b16 %v419
    %v506 = vunpack.c.h.b16 %v419
    %v507 = vunpack.c.l.b16 %v420
    %v508 = vunpack.c.h.b16 %v420
    %v509 = vunpack.c.l.b16 %v421
    %v510 = vunpack.c.h.b16 %v421
    %v511 = vunpack.c.l.b16 %v422
    %v512 = vunpack.c.h.b16 %v422
    %v513 = vunpack.c.l.b16 %v423
    %v514 = vunpack.c.h.b16 %v423
    %v515 = vunpack.c.l.b16 %v424
    %v516 = vunpack.c.h.b16 %v424
    %v517 = vunpack.c.l.b16 %v425
    %v518 = vunpack.c.h.b16 %v425
    %v519 = vunpack.c.l.b16 %v426
    %v520 = vunpack.c.h.b16 %v426
    %v521 = vunpack.c.l.b16 %v427
    %v522 = vunpack.c.h.b16 %v427
    %v523 = vunpack.c.l.b16 %v428
    %v524 = vunpack.c.h.b16 %v428
    %v525 = vunpack.c.l.b16 %v429
    %v526 = vunpack.c.h.b16 %v429
    %v527 = vunpack.c.l.b16 %v430
    %v528 = vunpack.c.h.b16 %v430
    %v529 = vunpack.c.l.b16 %v431
    %v530 = vunpack.c.h.b16 %v431
    %v531 = vunpack.c.l.b16 %v432
    %v532 = vunpack.c.h.b16 %v432
    %v533 = vunpack.c.l.b16 %v433
    %v534 = vunpack.c.h.b16 %v433
    %v535 = vunpack.c.l.b16 %v434
    %v536 = vunpack.c.h.b16 %v434
    %v537 = vpack.c.b16 %v475, %v473
    %v538 = vpack.c.b16 %v476, %v474
    %v539 = vpack.c.b16 %v479, %v477
    %v540 = vpack.c.b16 %v480, %v478
    %v541 = vpack.c.b16 %v483, %v481
    %v542 = vpack.c.b16 %v484, %v482
    %v543 = vpack.c.b16 %v487, %v485
    %v544 = vpack.c.b16 %v488, %v486
    %v545 = vpack.c.b16 %v491, %v489
    %v546 = vpack.c.b16 %v492, %v490
    %v547 = vpack.c.b16 %v495, %v493
    %v548 = vpack.c.b16 %v496, %v494
    %v549 = vpack.c.b16 %v499, %v497
    %v550 = vpack.c.b16 %v500, %v498
    %v551 = vpack.c.b16 %v503, %v501
    %v552 = vpack.c.b16 %v504, %v502
    %v553 = vpack.c.b16 %v507, %v505
    %v554 = vpack.c.b16 %v508, %v506
    %v555 = vpack.c.b16 %v511, %v509
    %v556 = vpack.c.b16 %v512, %v510
    %v557 = vpack.c.b16 %v515, %v513
    %v558 = vpack.c.b16 %v516, %v514
    %v559 = vpack.c.b16 %v519, %v517
    %v560 = vpack.c.b16 %v520, %v518
    %v561 = vpack.c.b16 %v523, %v521
    %v562 = vpack.c.b16 %v524, %v522
    %v563 = vpack.c.b16 %v527, %v525
    %v564 = vpack.c.b16 %v528, %v526
    %v565 = vpack.c.b16 %v531, %v529
    %v566 = vpack.c.b16 %v532, %v530
    %v567 = vpack.c.b16 %v535, %v533
    %v568 = vpack.c.b16 %v536, %v534
    %601 = vmatpush.bf16.msra.mxu0 %v551
    %602 = vmatpush.bf16.msra.mxu0 %v549
    %603 = vmatpush.bf16.msra.mxu0 %v547
    %604 = vmatpush.bf16.msra.mxu0 %v545
    %605 = vmatpush.bf16.msra.mxu0 %v543
    %606 = vmatpush.bf16.msra.mxu0 %v541
    %607 = vmatpush.bf16.msra.mxu0 %v539
    %608 = vmatpush.bf16.msra.mxu0 %v537
    %609 = vmatmul.bf16.gmra.mxu0 %v401
    %v610 = vpop.f32.mrf.mxu0
    %v611 = vadd.f32 %v437, %v610
    %v612 = vpop.f32.mrf.mxu0
    %613 = vdwg.mxu0
    %614 = vmatpush.bf16.msra.mxu0 %v567
    %615 = vmatpush.bf16.msra.mxu0 %v565
    %616 = vmatpush.bf16.msra.mxu0 %v563
    %617 = vmatpush.bf16.msra.mxu0 %v561
    %618 = vmatpush.bf16.msra.mxu0 %v559
    %619 = vmatpush.bf16.msra.mxu0 %v557
    %620 = vmatpush.bf16.msra.mxu0 %v555
    %621 = vmatpush.bf16.msra.mxu0 %v553
    %622 = vmatmul.bf16.gmra.mxu0 %v402
    %v623 = vpop.f32.mrf.mxu0
    %v624 = vadd.f32 %v611, %v623
    %v625 = vpop.f32.mrf.mxu0
    %626 = vdwg.mxu0
    %627 = vmatpush.bf16.msra.mxu0 %v552
    %628 = vmatpush.bf16.msra.mxu0 %v550
    %629 = vmatpush.bf16.msra.mxu0 %v548
    %630 = vmatpush.bf16.msra.mxu0 %v546
    %631 = vmatpush.bf16.msra.mxu0 %v544
    %632 = vmatpush.bf16.msra.mxu0 %v542
    %633 = vmatpush.bf16.msra.mxu0 %v540
    %634 = vmatpush.bf16.msra.mxu0 %v538
    %635 = vmatmul.bf16.gmra.mxu0 %v401
    %v636 = vpop.f32.mrf.mxu0
    %v637 = vadd.f32 %v438, %v636
    %v638 = vpop.f32.mrf.mxu0
    %639 = vdwg.mxu0
    %640 = vmatpush.bf16.msra.mxu0 %v568
    %641 = vmatpush.bf16.msra.mxu0 %v566
    %642 = vmatpush.bf16.msra.mxu0 %v564
    %643 = vmatpush.bf16.msra.mxu0 %v562
    %644 = vmatpush.bf16.msra.mxu0 %v560
    %645 = vmatpush.bf16.msra.mxu0 %v558
    %646 = vmatpush.bf16.msra.mxu0 %v556
    %647 = vmatpush.bf16.msra.mxu0 %v554
    %648 = vmatmul.bf16.gmra.mxu0 %v402
    %v649 = vpop.f32.mrf.mxu0
    %v650 = vadd.f32 %v637, %v649
    %v651 = vpop.f32.mrf.mxu0
    %652 = vdwg.mxu0
    %vm653 = vcmp.gt.f32.partialorder %v624, 0.0
    %vm654 = vcmp.gt.f32.partialorder %v650, 0.0
    %v655 = vmul.f32 %v624, 0.01
    %v656 = vmul.f32 %v650, 0.01
    %v657 = vsel %vm653, %v624, %v655
    %v658 = vsel %vm654, %v650, %v656
    %v659 = vpack.c.bf16 %v657, %v657
    %v660 = vpack.c.bf16 %v658, %v658
    %v661 = vld [vmem:[%s8] sm:$0xf]
    %v662 = vld [vmem:[%s8 + $0x4] sm:$0xf]
    %v663 = vld [vmem:[%s8 + $0x8] sm:$0xf]
    %v664 = vld [vmem:[%s8 + $0xc] sm:$0xf]
    %v665 = vld [vmem:[%s8 + $0x10] sm:$0xf]
    %v666 = vld [vmem:[%s8 + $0x14] sm:$0xf]
    %v667 = vld [vmem:[%s8 + $0x18] sm:$0xf]
    %v668 = vld [vmem:[%s8 + $0x1c] sm:$0xf]
    %v669 = vld [vmem:[%s8 + $0x20] sm:$0xf]
    %v670 = vld [vmem:[%s8 + $0x24] sm:$0xf]
    %v671 = vld [vmem:[%s8 + $0x28] sm:$0xf]
    %v672 = vld [vmem:[%s8 + $0x2c] sm:$0xf]
    %v673 = vld [vmem:[%s8 + $0x30] sm:$0xf]
    %v674 = vld [vmem:[%s8 + $0x34] sm:$0xf]
    %v675 = vld [vmem:[%s8 + $0x38] sm:$0xf]
    %v676 = vld [vmem:[%s8 + $0x3c] sm:$0xf]
    %v677 = vld [vmem:[%s8 + $0x40] sm:$0xf]
    %v678 = vld [vmem:[%s8 + $0x44] sm:$0xf]
    %v679 = vld [vmem:[%s8 + $0x48] sm:$0xf]
    %v680 = vld [vmem:[%s8 + $0x4c] sm:$0xf]
    %v681 = vld [vmem:[%s8 + $0x50] sm:$0xf]
    %v682 = vld [vmem:[%s8 + $0x54] sm:$0xf]
    %v683 = vld [vmem:[%s8 + $0x58] sm:$0xf]
    %v684 = vld [vmem:[%s8 + $0x5c] sm:$0xf]
    %v685 = vld [vmem:[%s8 + $0x60] sm:$0xf]
    %v686 = vld [vmem:[%s8 + $0x64] sm:$0xf]
    %v687 = vld [vmem:[%s8 + $0x68] sm:$0xf]
    %v688 = vld [vmem:[%s8 + $0x6c] sm:$0xf]
    %v689 = vld [vmem:[%s8 + $0x70] sm:$0xf]
    %v690 = vld [vmem:[%s8 + $0x74] sm:$0xf]
    %v691 = vld [vmem:[%s8 + $0x78] sm:$0xf]
    %v692 = vld [vmem:[%s8 + $0x7c] sm:$0xf]
    %v693 = vld [vmem:[#allocation2] sm:$0x1]
    %v695 = vperm.slane %v693, 0
    %v729 = vunpack.c.l.b16 %v661
    %v730 = vunpack.c.l.b16 %v662
    %v731 = vunpack.c.l.b16 %v663
    %v732 = vunpack.c.l.b16 %v664
    %v733 = vunpack.c.l.b16 %v665
    %v734 = vunpack.c.l.b16 %v666
    %v735 = vunpack.c.l.b16 %v667
    %v736 = vunpack.c.l.b16 %v668
    %v737 = vunpack.c.l.b16 %v669
    %v738 = vunpack.c.l.b16 %v670
    %v739 = vunpack.c.l.b16 %v671
    %v740 = vunpack.c.l.b16 %v672
    %v741 = vunpack.c.l.b16 %v673
    %v742 = vunpack.c.l.b16 %v674
    %v743 = vunpack.c.l.b16 %v675
    %v744 = vunpack.c.l.b16 %v676
    %v745 = vunpack.c.l.b16 %v677
    %v746 = vunpack.c.l.b16 %v678
    %v747 = vunpack.c.l.b16 %v679
    %v748 = vunpack.c.l.b16 %v680
    %v749 = vunpack.c.l.b16 %v681
    %v750 = vunpack.c.l.b16 %v682
    %v751 = vunpack.c.l.b16 %v683
    %v752 = vunpack.c.l.b16 %v684
    %v753 = vunpack.c.l.b16 %v685
    %v754 = vunpack.c.l.b16 %v686
    %v755 = vunpack.c.l.b16 %v687
    %v756 = vunpack.c.l.b16 %v688
    %v757 = vunpack.c.l.b16 %v689
    %v758 = vunpack.c.l.b16 %v690
    %v759 = vunpack.c.l.b16 %v691
    %v760 = vunpack.c.l.b16 %v692
    %v761 = vpack.c.b16 %v730, %v729
    %v762 = vpack.c.b16 %v732, %v731
    %v763 = vpack.c.b16 %v734, %v733
    %v764 = vpack.c.b16 %v736, %v735
    %v765 = vpack.c.b16 %v738, %v737
    %v766 = vpack.c.b16 %v740, %v739
    %v767 = vpack.c.b16 %v742, %v741
    %v768 = vpack.c.b16 %v744, %v743
    %v769 = vpack.c.b16 %v746, %v745
    %v770 = vpack.c.b16 %v748, %v747
    %v771 = vpack.c.b16 %v750, %v749
    %v772 = vpack.c.b16 %v752, %v751
    %v773 = vpack.c.b16 %v754, %v753
    %v774 = vpack.c.b16 %v756, %v755
    %v775 = vpack.c.b16 %v758, %v757
    %v776 = vpack.c.b16 %v760, %v759
    %793 = vmatpush.bf16.msra.mxu0 %v768
    %794 = vmatpush.bf16.msra.mxu0 %v767
    %795 = vmatpush.bf16.msra.mxu0 %v766
    %796 = vmatpush.bf16.msra.mxu0 %v765
    %797 = vmatpush.bf16.msra.mxu0 %v764
    %798 = vmatpush.bf16.msra.mxu0 %v763
    %799 = vmatpush.bf16.msra.mxu0 %v762
    %800 = vmatpush.bf16.msra.mxu0 %v761
    %801 = vmatmul.bf16.gmra.mxu0 %v659
    %v802 = vpop.f32.mrf.mxu0
    %v803 = vadd.f32 %v695, %v802
    %v804 = vpop.f32.mrf.mxu0
    %805 = vdwg.mxu0
    %806 = vmatpush.bf16.msra.mxu0 %v776
    %807 = vmatpush.bf16.msra.mxu0 %v775
    %808 = vmatpush.bf16.msra.mxu0 %v774
    %809 = vmatpush.bf16.msra.mxu0 %v773
    %810 = vmatpush.bf16.msra.mxu0 %v772
    %811 = vmatpush.bf16.msra.mxu0 %v771
    %812 = vmatpush.bf16.msra.mxu0 %v770
    %813 = vmatpush.bf16.msra.mxu0 %v769
    %814 = vmatmul.bf16.gmra.mxu0 %v660
    %v815 = vpop.f32.mrf.mxu0
    %v816 = vadd.f32 %v803, %v815
    %v817 = vpop.f32.mrf.mxu0
    %818 = vdwg.mxu0
    %vm819 = vcmask 7168
    %820 = vst.msk [vmem:[%s10] sm:$0xff] %vm819, %v816
    // Predicated region
    $region50: #{tpu_custom_call.1} parent=1 // pred_check
      _
    $region51: #{tpu_custom_call.1} parent=1 // pred_check_branch
      %822 = sbr.rel (0) target = $region53
    $region52: #{tpu_custom_call.1} parent=1 // pred_region
      _
    $region53: #{tpu_custom_call.1} parent=1 // pred_fallthru
      _
    // Predicated region
    $region54: #{tpu_custom_call.1} parent=1 // pred_check
      _
    $region55: #{tpu_custom_call.1} parent=1 // pred_check_branch
      %824 = sbr.rel (0) target = $region57
    $region56: #{tpu_custom_call.1} parent=1 // pred_region
      _
    $region57: #{tpu_custom_call.1} parent=1 // pred_fallthru
      _
    %825 = vsyncpa [#allocation4], 1
    %826 = vsyncpa [#allocation6], 1

</llo_original>
